<compile_context>
chip_gen: v5e
topology: v5e:2x2
jax: 0.10.0
libtpu: 0.0.40
codegen_flags: <defaults>
</compile_context>

<pallas_src>
import functools

import jax
import jax.numpy as jnp
from jax.experimental import pallas as pl
from jax.experimental.pallas import tpu as pltpu


# ----------------------------------------------------------------------------- utils
def _round_up(x, m):
    return ((x + m - 1) // m) * m


# ------------------------------------------------------------------- Pallas matmul
def _mm_kernel(a_ref, b_ref, scale_ref, shift_ref, o_ref, acc_ref, *, relu):
    k = pl.program_id(2)

    @pl.when(k == 0)
    def _():
        acc_ref[...] = jnp.zeros_like(acc_ref)

    acc_ref[...] += jnp.dot(a_ref[...], b_ref[...],
                            preferred_element_type=jnp.float32)

    @pl.when(k == pl.num_programs(2) - 1)
    def _():
        r = acc_ref[...] * scale_ref[...] + shift_ref[...]
        if relu:
            r = jnp.maximum(r, 0.0)
        o_ref[...] = r.astype(o_ref.dtype)


@functools.lru_cache(maxsize=None)
def _build_matmul(Mp, Kp, Np, tm, tk, tn, relu):
    kernel = functools.partial(_mm_kernel, relu=relu)
    return pl.pallas_call(
        kernel,
        out_shape=jax.ShapeDtypeStruct((Mp, Np), jnp.float32),
        grid_spec=pltpu.PrefetchScalarGridSpec(
            num_scalar_prefetch=0,
            grid=(Mp // tm, Np // tn, Kp // tk),
            in_specs=[
                pl.BlockSpec((tm, tk), lambda i, j, k: (i, k)),
                pl.BlockSpec((tk, tn), lambda i, j, k: (k, j)),
                pl.BlockSpec((1, tn), lambda i, j, k: (0, j)),
                pl.BlockSpec((1, tn), lambda i, j, k: (0, j)),
            ],
            out_specs=pl.BlockSpec((tm, tn), lambda i, j, k: (i, j)),
            scratch_shapes=[pltpu.VMEM((tm, tn), jnp.float32)],
        ),
        compiler_params=pltpu.CompilerParams(
            dimension_semantics=("parallel", "parallel", "arbitrary")),
    )


def _pick_tiles(M, K, N):
    Mp8 = _round_up(M, 8)
    tm = 256 if Mp8 >= 256 else Mp8
    Mp = _round_up(M, tm)
    Kp = _round_up(K, 128)            # pad K only to lane multiple (no tk over-pad)
    if Kp <= 1024:
        tk = Kp
    else:
        tk = 512
        while Kp % tk:                # pick a divisor of Kp (multiple of 128)
            tk -= 128
    Np = _round_up(N, 128)
    if Np <= 512:
        tn = Np                       # grid collapses over N -> A streamed once
    elif Np % 256 == 0:
        tn = 256                      # big-N layers (br1): 256-wide for 256x256 MXU
    else:
        tn = 128
    return tm, tk, tn, Mp, Kp, Np


def matmul_fused(a, b, scale=None, shift=None, relu=False):
    """(M,K) @ (K,N), bf16 operands / fp32 accumulate, fused y*scale+shift (+ReLU)."""
    M, K = a.shape
    _, N = b.shape
    tm, tk, tn, Mp, Kp, Np = _pick_tiles(M, K, N)
    a_p = jnp.pad(a.astype(jnp.bfloat16), ((0, Mp - M), (0, Kp - K)))
    b_p = jnp.pad(b.astype(jnp.bfloat16), ((0, Kp - K), (0, Np - N)))
    if scale is None:
        scale = jnp.ones((N,), jnp.float32)
    if shift is None:
        shift = jnp.zeros((N,), jnp.float32)
    scale_p = jnp.pad(scale.astype(jnp.float32).reshape(1, N), ((0, 0), (0, Np - N)))
    shift_p = jnp.pad(shift.astype(jnp.float32).reshape(1, N), ((0, 0), (0, Np - N)))
    fn = _build_matmul(Mp, Kp, Np, tm, tk, tn, bool(relu))
    out = fn(a_p, b_p, scale_p, shift_p)
    return out[:M, :N]


# ------------------------------------------------------------------- conv via im2col
def conv2d(x, w, b=None, stride=1, padding=0, dilation=1, relu=False, bn=None,
           eps=1e-5):
    """x: NHWC float32.  w: PyTorch OIHW (Cout, Cin, kh, kw).
    Optional `bn` dict fuses a post-conv BatchNorm (eval) into the matmul epilogue."""
    N, H, W, Cin = x.shape
    Cout, _, kh, kw = w.shape

    # Fold bias + optional post-conv BN into per-output-channel scale/shift.
    if bn is not None:
        s = bn["gamma"] / jnp.sqrt(bn["var"] + eps)
        base = b if b is not None else jnp.zeros((Cout,), jnp.float32)
        scale = s
        shift = (base - bn["mean"]) * s + bn["beta"]
    else:
        scale = None
        shift = b

    wm = jnp.transpose(w, (2, 3, 1, 0)).reshape(kh * kw * Cin, Cout)

    # Fast path: 1x1 / stride 1 / no padding -> plain GEMM, no im2col or pad copies.
    if kh == 1 and kw == 1 and stride == 1 and padding == 0 and dilation == 1:
        a = x.reshape(N * H * W, Cin)
        out = matmul_fused(a, wm, scale, shift, relu=relu)
        return out.reshape(N, H, W, Cout)

    Ho = (H + 2 * padding - dilation * (kh - 1) - 1) // stride + 1
    Wo = (W + 2 * padding - dilation * (kw - 1) - 1) // stride + 1
    # Emit im2col patches in bf16: halves the materialized HBM traffic of A.
    xp = jnp.pad(x.astype(jnp.bfloat16),
                 ((0, 0), (padding, padding), (padding, padding), (0, 0)))
    cols = []
    for ky in range(kh):
        for kx in range(kw):
            y0 = ky * dilation
            x0 = kx * dilation
            cols.append(xp[:, y0:y0 + (Ho - 1) * stride + 1:stride,
                              x0:x0 + (Wo - 1) * stride + 1:stride, :])
    patches = jnp.concatenate(cols, axis=-1)                 # (N,Ho,Wo,kh*kw*Cin)
    a = patches.reshape(N * Ho * Wo, kh * kw * Cin)
    out = matmul_fused(a, wm, scale, shift, relu=relu)
    return out.reshape(N, Ho, Wo, Cout)


# ------------------------------------------------------------------- plain-JAX glue
def batchnorm(x, p, eps=1e-5, relu=False):
    scale = p["gamma"] / jnp.sqrt(p["var"] + eps)
    y = (x - p["mean"]) * scale + p["beta"]
    return jnp.maximum(y, 0.0) if relu else y


def maxpool2d(x, k=3, stride=2, pad=1):
    N, H, W, C = x.shape
    xp = jnp.pad(x, ((0, 0), (pad, pad), (pad, pad), (0, 0)),
                 constant_values=-jnp.inf)
    Ho = (H + 2 * pad - k) // stride + 1
    Wo = (W + 2 * pad - k) // stride + 1
    vals = []
    for ky in range(k):
        for kx in range(k):
            vals.append(xp[:, ky:ky + (Ho - 1) * stride + 1:stride,
                              kx:kx + (Wo - 1) * stride + 1:stride, :])
    return jnp.max(jnp.stack(vals, 0), axis=0)


def avgpool2x2(x):
    N, H, W, C = x.shape
    return jnp.mean(x.reshape(N, H // 2, 2, W // 2, 2, C), axis=(2, 4))


def avgpool3x3_s1_p1(x):
    # PyTorch AvgPool2d(3,1,padding=1), count_include_pad=True -> divide by 9.
    N, H, W, C = x.shape
    xp = jnp.pad(x, ((0, 0), (1, 1), (1, 1), (0, 0)))
    s = jnp.zeros_like(x)
    for ky in range(3):
        for kx in range(3):
            s = s + xp[:, ky:ky + H, kx:kx + W, :]
    return s / 9.0


def upsample2(x):  # nn.Upsample(scale_factor=2), mode='nearest'
    return jnp.repeat(jnp.repeat(x, 2, axis=1), 2, axis=2)


# ------------------------------------------------------------------- parameters
class _Init:
    def __init__(self, seed):
        self.key = jax.random.PRNGKey(seed)

    def _next(self):
        self.key, sub = jax.random.split(self.key)
        return sub

    def conv(self, cout, cin, kh, kw, bias=False):
        fan_in = cin * kh * kw
        w = jax.random.normal(self._next(), (cout, cin, kh, kw),
                              jnp.float32) * (2.0 / fan_in) ** 0.5
        b = (jax.random.normal(self._next(), (cout,), jnp.float32) * 0.01
             if bias else None)
        return {"w": w, "b": b}

    def bn(self, c):  # eval-mode defaults of a fresh nn.BatchNorm2d
        return {"gamma": jnp.ones((c,), jnp.float32),
                "beta": jnp.zeros((c,), jnp.float32),
                "mean": jnp.zeros((c,), jnp.float32),
                "var": jnp.ones((c,), jnp.float32)}


def make_params(in_channel=3, growth_rate=32, block_layers=(6, 12, 24, 16)):
    ini = _Init(42)
    P = {}
    P["block1_conv"] = ini.conv(64, in_channel, 7, 7, bias=True)
    P["block1_bn"] = ini.bn(64)

    def dense_params(cin, num):
        layers, ch = [], cin
        for _ in range(num):
            layers.append({"bn": ini.bn(ch),
                           "conv": ini.conv(growth_rate, ch, 3, 3, bias=False)})
            ch += growth_rate
        return layers

    def trans_params(cin):
        return {"bn": ini.bn(cin), "conv": ini.conv(cin // 2, cin, 1, 1, bias=True)}

    def br_params(cin, cout):
        return {"c1": ini.conv(cout, cin, 3, 3), "c2": ini.conv(cout, cout, 3, 3)}

    def scse_params(cin, cout):
        return {"sq": ini.conv(cin // 2, cin, 1, 1),
                "ex": ini.conv(cin, cin // 2, 1, 1),
                "sse": ini.conv(1, cin, 1, 1),
                "br": br_params(cin, cout)}

    P["DB1"] = dense_params(64, block_layers[0])          # -> 256
    P["TL1"] = trans_params(256)                          # -> 128, /2
    P["DB2"] = dense_params(128, block_layers[1])         # -> 512
    P["TL2"] = trans_params(512)                          # -> 256, /2
    P["DB3"] = dense_params(256, block_layers[2])         # -> 1024
    P["fp1"] = {"b1": ini.conv(256, 1024, 1, 1),
                "b2": ini.conv(256, 1024, 3, 3),
                "b3": ini.conv(256, 1024, 3, 3),
                "b4": ini.conv(256, 1024, 3, 3)}
    P["br1"] = br_params(3072, 1024)
    P["cs1"] = scse_params(1024, 512)
    P["cs2"] = scse_params(512, 256)
    P["cs3"] = scse_params(256, 64)
    P["cs4"] = scse_params(64, 64)
    P["br2"] = br_params(64, 2)
    return P


# ------------------------------------------------------------------- sub-modules
def conv_block_f(x, p):               # BN -> ReLU -> Conv3x3(pad=1, no bias)
    x = batchnorm(x, p["bn"], relu=True)     # pre-BN + ReLU (cannot fold into conv)
    return conv2d(x, p["conv"]["w"], None, padding=1)


def dense_block_f(x, layers):
    for p in layers:
        out = conv_block_f(x, p)
        x = jnp.concatenate([out, x], axis=-1)
    return x


def transition_f(x, p):               # BN -> ReLU -> Conv1x1(bias) -> AvgPool2
    x = batchnorm(x, p["bn"], relu=True)
    x = conv2d(x, p["conv"]["w"], p["conv"]["b"], padding=0)
    return avgpool2x2(x)


def br_f(x, p):                       # Conv3x3 -> ReLU (fused) -> Conv3x3
    x = conv2d(x, p["c1"]["w"], None, padding=1, relu=True)
    return conv2d(x, p["c2"]["w"], None, padding=1)


def fpm_f(x, p):
    o1 = conv2d(x, p["b1"]["w"], None, padding=0)
    o2 = conv2d(x, p["b2"]["w"], None, padding=6, dilation=6)
    o3 = conv2d(x, p["b3"]["w"], None, padding=12, dilation=12)
    o4 = conv2d(x, p["b4"]["w"], None, padding=18, dilation=18)
    o5 = avgpool3x3_s1_p1(x)
    # Dropout(0.5) in eval mode -> identity.
    return jnp.concatenate([o1, x, o2, o3, o4, o5], axis=-1)   # 3072 channels


def scse_f(x, p):
    # sSE: Cout=1 1x1 conv -> VPU channel reduction (avoid a 1-lane MXU matmul).
    w_sse = p["sse"]["w"].reshape(-1)                           # (Cin,)
    q = jnp.einsum('nhwc,c->nhw', x, w_sse)[..., None]
    u_sse = x * jax.nn.sigmoid(q)
    # cSE: channel gate on a (N, C) tensor -> tiny plain jnp matmuls (M = batch).
    z = jnp.mean(x, axis=(1, 2))                                # AdaptiveAvgPool2d(1)
    w_sq = p["sq"]["w"].reshape(p["sq"]["w"].shape[0], -1)      # (C/2, C)
    w_ex = p["ex"]["w"].reshape(p["ex"]["w"].shape[0], -1)      # (C, C/2)
    z = z @ w_sq.T
    z = z @ w_ex.T
    u_cse = x * jax.nn.sigmoid(z)[:, None, None, :]
    return br_f(u_cse + u_sse, p["br"])


# ------------------------------------------------------------------- full forward
def desnet_forward(x_nchw, P):
    x = jnp.transpose(x_nchw.astype(jnp.float32), (0, 2, 3, 1))      # NCHW -> NHWC
    # block1: Conv7x7/2(bias) + BN + ReLU fused into one Pallas matmul epilogue,
    # then MaxPool3/2.
    x = conv2d(x, P["block1_conv"]["w"], P["block1_conv"]["b"],
               stride=2, padding=3, bn=P["block1_bn"], relu=True)
    x = maxpool2d(x, 3, 2, 1)

    x1 = dense_block_f(x, P["DB1"])          # 256 ch @ H/4
    x = transition_f(x1, P["TL1"])           # 128 ch @ H/8
    x2 = dense_block_f(x, P["DB2"])          # 512 ch @ H/8
    x = transition_f(x2, P["TL2"])           # 256 ch @ H/16
    x3 = dense_block_f(x, P["DB3"])          # 1024 ch @ H/16

    x = br_f(fpm_f(x3, P["fp1"]), P["br1"])  # 1024 ch @ H/16
    x = upsample2(scse_f(x, P["cs1"])) + x2  # 512 ch @ H/8
    x = upsample2(scse_f(x, P["cs2"])) + x1  # 256 ch @ H/4
    x = upsample2(scse_f(x, P["cs3"]))       # 64 ch @ H/2
    x = upsample2(scse_f(x, P["cs4"]))       # 64 ch @ H
    x = br_f(x, P["br2"])                    # 2 ch @ H
    return jnp.transpose(x, (0, 3, 1, 2))    # NHWC -> NCHW


# ------------------------------------------------------------------- main
if __name__ == "__main__":
    params = make_params(in_channel=3)
    x = jax.random.normal(jax.random.PRNGKey(0), (2, 3, 16, 16), jnp.float32)
    out = desnet_forward(x, params)
    out = jax.block_until_ready(out)
    assert out.shape == (2, 2, 16, 16), out.shape
    assert bool(jnp.all(jnp.isfinite(out)))
    print("KERNEL_OK")
</pallas_src>

<mosaic_0001>
module attributes {stable_mosaic.version = 11 : i64} {
  func.func @_mm_kernel(%arg0: i32, %arg1: i32, %arg2: i32, %arg3: memref<128x256xbf16, #tpu.memory_space<vmem>>, %arg4: memref<256x128xbf16, #tpu.memory_space<vmem>>, %arg5: memref<1x128xf32, #tpu.memory_space<vmem>>, %arg6: memref<1x128xf32, #tpu.memory_space<vmem>>, %arg7: memref<128x128xf32, #tpu.memory_space<vmem>>, %arg8: memref<128x128xf32, #tpu.memory_space<vmem>>) attributes {dimension_semantics = [#tpu.dimension_semantics<parallel>, #tpu.dimension_semantics<parallel>, #tpu.dimension_semantics<arbitrary>], iteration_bounds = array<i64: 1, 1, 1>, scalar_prefetch = 0 : i64, scratch_operands = 1 : i64, tpu.core_type = #tpu.core_type<tc>, window_params = [{transform_indices = @transform_0, window_bounds = array<i64: 128, 256>}, {transform_indices = @transform_1, window_bounds = array<i64: 256, 128>}, {transform_indices = @transform_2, window_bounds = array<i64: 1, 128>}, {transform_indices = @transform_3, window_bounds = array<i64: 1, 128>}, {transform_indices = @transform_4, window_bounds = array<i64: 128, 128>}]} {
    %c0_i32 = arith.constant 0 : i32
    %0 = arith.cmpi eq, %arg2, %c0_i32 : i32
    %1 = arith.extui %0 : i1 to i32
    %c0_i32_0 = arith.constant 0 : i32
    %2 = arith.cmpi ne, %1, %c0_i32_0 : i32
    scf.if %2 {
      %cst_10 = arith.constant 0.000000e+00 : f32
      %12 = vector.broadcast %cst_10 : f32 to vector<128x128xf32>
      %c0_11 = arith.constant 0 : index
      %c0_12 = arith.constant 0 : index
      %13 = vector.load %arg8[%c0_11, %c0_12] : memref<128x128xf32, #tpu.memory_space<vmem>>, vector<128x128xf32>
      tpu.vector_store %arg8[%c0_11, %c0_12], %12 {strides = array<i32>} : memref<128x128xf32, #tpu.memory_space<vmem>>, vector<128x128xf32>,
    } else {
    }
    %c0 = arith.constant 0 : index
    %c0_1 = arith.constant 0 : index
    %3 = vector.load %arg8[%c0, %c0_1] : memref<128x128xf32, #tpu.memory_space<vmem>>, vector<128x128xf32>
    %c0_2 = arith.constant 0 : index
    %c0_3 = arith.constant 0 : index
    %4 = vector.load %arg3[%c0_2, %c0_3] : memref<128x256xbf16, #tpu.memory_space<vmem>>, vector<128x256xbf16>
    %c0_4 = arith.constant 0 : index
    %c0_5 = arith.constant 0 : index
    %5 = vector.load %arg4[%c0_4, %c0_5] : memref<256x128xbf16, #tpu.memory_space<vmem>>, vector<256x128xbf16>
    %cst = arith.constant dense<0.000000e+00> : vector<128x128xf32>
    %6 = tpu.matmul %4, %5, %cst {dimension_numbers = #tpu.dot_dimension_numbers<[1], [0], [0], [1], [0, 0, 1, 1], [], []>} : vector<128x256xbf16>, vector<256x128xbf16>, vector<128x128xf32> -> vector<128x128xf32>
    %7 = arith.addf %3, %6 : vector<128x128xf32>
    %c0_6 = arith.constant 0 : index
    %c0_7 = arith.constant 0 : index
    %8 = vector.load %arg8[%c0_6, %c0_7] : memref<128x128xf32, #tpu.memory_space<vmem>>, vector<128x128xf32>
    tpu.vector_store %arg8[%c0_6, %c0_7], %7 {strides = array<i32>} : memref<128x128xf32, #tpu.memory_space<vmem>>, vector<128x128xf32>,
    %c0_i32_8 = arith.constant 0 : i32
    %9 = arith.cmpi eq, %arg2, %c0_i32_8 : i32
    %10 = arith.extui %9 : i1 to i32
    %c0_i32_9 = arith.constant 0 : i32
    %11 = arith.cmpi ne, %10, %c0_i32_9 : i32
    scf.if %11 {
      %c0_10 = arith.constant 0 : index
      %c0_11 = arith.constant 0 : index
      %12 = vector.load %arg8[%c0_10, %c0_11] : memref<128x128xf32, #tpu.memory_space<vmem>>, vector<128x128xf32>
      %c0_12 = arith.constant 0 : index
      %c0_13 = arith.constant 0 : index
      %13 = vector.load %arg5[%c0_12, %c0_13] : memref<1x128xf32, #tpu.memory_space<vmem>>, vector<1x128xf32>
      %14 = vector.broadcast %13 : vector<1x128xf32> to vector<128x128xf32>
      %15 = arith.mulf %12, %14 : vector<128x128xf32>
      %c0_14 = arith.constant 0 : index
      %c0_15 = arith.constant 0 : index
      %16 = vector.load %arg6[%c0_14, %c0_15] : memref<1x128xf32, #tpu.memory_space<vmem>>, vector<1x128xf32>
      %17 = vector.broadcast %16 : vector<1x128xf32> to vector<128x128xf32>
      %18 = arith.addf %15, %17 : vector<128x128xf32>
      %cst_16 = arith.constant 0.000000e+00 : f32
      %19 = vector.broadcast %cst_16 : f32 to vector<128x128xf32>
      %20 = arith.maximumf %18, %19 : vector<128x128xf32>
      %c0_17 = arith.constant 0 : index
      %c0_18 = arith.constant 0 : index
      %21 = vector.load %arg7[%c0_17, %c0_18] : memref<128x128xf32, #tpu.memory_space<vmem>>, vector<128x128xf32>
      tpu.vector_store %arg7[%c0_17, %c0_18], %20 {strides = array<i32>} : memref<128x128xf32, #tpu.memory_space<vmem>>, vector<128x128xf32>,
    } else {
    }
    return
  }
  func.func @transform_0(%arg0: i32, %arg1: i32, %arg2: i32) -> (i32, i32) {
    %c0_i32 = arith.constant 0 : i32
    return %arg0, %arg2 : i32, i32
  }
  func.func @transform_1(%arg0: i32, %arg1: i32, %arg2: i32) -> (i32, i32) {
    %c0_i32 = arith.constant 0 : i32
    return %arg2, %arg1 : i32, i32
  }
  func.func @transform_2(%arg0: i32, %arg1: i32, %arg2: i32) -> (i32, i32) {
    %c0_i32 = arith.constant 0 : i32
    %c0_i32_0 = arith.constant 0 : i32
    return %c0_i32, %arg1 : i32, i32
  }
  func.func @transform_3(%arg0: i32, %arg1: i32, %arg2: i32) -> (i32, i32) {
    %c0_i32 = arith.constant 0 : i32
    %c0_i32_0 = arith.constant 0 : i32
    return %c0_i32, %arg1 : i32, i32
  }
  func.func @transform_4(%arg0: i32, %arg1: i32, %arg2: i32) -> (i32, i32) {
    %c0_i32 = arith.constant 0 : i32
    return %arg0, %arg1 : i32, i32
  }
}

</mosaic_0001>

<llo_original>
// kernel: tpu_custom_call.1
$region0: #{tpu_custom_call.1}
  #allocation0 [shape = 'u32[]', space=smem, size = 0x4, offset = 0x4, fixed_abs, tag = 'smem constant byte address 0x4 - core index']
  #allocation1 [shape = 'u32[72,128]{1,0:T(1,128)}', space=vmem, size = 0x9000, scoped, tag = 'internal scratch']
  #allocation2 [shape = 'f32[128,128]{1,0:T(8,128)}', space=vmem, size = 0x10000, scoped, tag = 'scratch operand']
  %s0 = inlined_call_operand.hbm [shape: bf16[128,256], index: 0, kind: input, shape index: {}]
  %s1 = inlined_call_operand.hbm [shape: bf16[256,128], index: 1, kind: input, shape index: {}]
  %s2 = inlined_call_operand.vmem [shape: f32[1,128], index: 2, kind: input, shape index: {}]
  %s3 = inlined_call_operand.vmem [shape: f32[1,128], index: 3, kind: input, shape index: {}]
  %s4 = inlined_call_operand.hbm [shape: f32[128,128], index: 4, kind: output, shape index: {}]
  %s5 = sld [smem:[#allocation0]]
  $region42: #{tpu_custom_call.1} parent=0
    _
  %s7 = ssub.s32 1, %s5
  %s8 = scalar_select 0, %s7, %s5
  $region1: #{tpu_custom_call.1} parent=0
    #allocation3 [shape = 'u8[65536]{0}', space=vmem, size = 0x10000, scoped, tag = 'input window, operand 0, single buffered']
    #allocation4 [shape = 's32[1]{0}', space=sflag, size = 0x4, scoped, tag = 'scoped memory for tpu_custom_call.1']
    #allocation5 [shape = 's32[1]{0}', space=sflag, size = 0x4, scoped, tag = 'scoped memory for tpu_custom_call.1']
    #allocation6 [shape = 'u8[65536]{0}', space=vmem, size = 0x10000, scoped, tag = 'input window, operand 1, single buffered']
    #allocation7 [shape = 's32[1]{0}', space=sflag, size = 0x4, scoped, tag = 'scoped memory for tpu_custom_call.1']
    #allocation8 [shape = 'u8[65536]{0}', space=vmem, size = 0x10000, scoped, tag = 'output window, operand 0, single buffered']
    %9 = vsyncpa [#allocation4], 0
    %10 = vsyncpa [#allocation7], 0
    %11 = vsyncpa [#allocation5], 0
    // Predicated region
    $region2: #{tpu_custom_call.1} parent=1 // pred_check
      _
    $region3: #{tpu_custom_call.1} parent=1 // pred_check_branch
      %13 = sbr.rel (0) target = $region5
    $region4: #{tpu_custom_call.1} parent=1 // pred_region
      %15 = vsyncadd [#allocation4], 0
      %s16 = sshll.u32 %s0, 4
      %s17 = int_to_ptr.hbm [resolvable:$true] %s16
      %s18 = sshll.u32 [#allocation3], 4
      %s19 = int_to_ptr.vmem [resolvable:$true] %s18
      %24 = dma.hbm_to_vmem [thread:$0]  %s17, 2048, %s19, [#allocation4], 128, 128, 8
    $region5: #{tpu_custom_call.1} parent=1 // pred_fallthru
      _
    // Predicated region
    $region6: #{tpu_custom_call.1} parent=1 // pred_check
      _
    $region7: #{tpu_custom_call.1} parent=1 // pred_check_branch
      %26 = sbr.rel (0) target = $region9
    $region8: #{tpu_custom_call.1} parent=1 // pred_region
      %28 = vsyncadd [#allocation7], 0
      %s29 = sshll.u32 %s1, 4
      %s30 = int_to_ptr.hbm [resolvable:$true] %s29
      %s31 = sshll.u32 [#allocation6], 4
      %s32 = int_to_ptr.vmem [resolvable:$true] %s31
      %37 = dma.hbm_to_vmem [thread:$0]  %s30, 2048, %s32, [#allocation7], 64, 64, 4
    $region9: #{tpu_custom_call.1} parent=1 // pred_fallthru
      _
    // Predicated region
    $region10: #{tpu_custom_call.1} parent=1 // pred_check
      _
    $region11: #{tpu_custom_call.1} parent=1 // pred_check_branch
      %39 = sbr.rel (0) target = $region13
    $region12: #{tpu_custom_call.1} parent=1 // pred_region
      _
    $region13: #{tpu_custom_call.1} parent=1 // pred_fallthru
      _
    // Predicated region
    $region14: #{tpu_custom_call.1} parent=1 // pred_check
      _
    $region15: #{tpu_custom_call.1} parent=1 // pred_check_branch
      %41 = sbr.rel (0) target = $region17
    $region16: #{tpu_custom_call.1} parent=1 // pred_region
      _
    $region17: #{tpu_custom_call.1} parent=1 // pred_fallthru
      _
    // Predicated region
    $region18: #{tpu_custom_call.1} parent=1 // pred_check
      _
    $region19: #{tpu_custom_call.1} parent=1 // pred_check_branch
      %43 = sbr.rel (0) target = $region21
    $region20: #{tpu_custom_call.1} parent=1 // pred_region
      %45 = dma.done [#allocation4], 2048
    $region21: #{tpu_custom_call.1} parent=1 // pred_fallthru
      _
    // Predicated region
    $region22: #{tpu_custom_call.1} parent=1 // pred_check
      _
    $region23: #{tpu_custom_call.1} parent=1 // pred_check_branch
      %47 = sbr.rel (0) target = $region25
    $region24: #{tpu_custom_call.1} parent=1 // pred_region
      %49 = dma.done [#allocation7], 2048
    $region25: #{tpu_custom_call.1} parent=1 // pred_fallthru
      _
    %p50 = scmp.eq.s32.totalorder 0, 0
    // Predicated region
    $region26: #{tpu_custom_call.1} parent=1 // pred_check
      %p51 = pneg %p50
    $region27: #{tpu_custom_call.1} parent=1 // pred_check_branch
      %53 = sbr.rel (%p51) target = $region29
    $region28: #{tpu_custom_call.1} parent=1 // pred_region
      %54 = vst [vmem:[#allocation2] sm:$0xff] 0.0
      %55 = vst [vmem:[#allocation2 + $0x8] sm:$0xff] 0.0
      %56 = vst [vmem:[#allocation2 + $0x10] sm:$0xff] 0.0
      %57 = vst [vmem:[#allocation2 + $0x18] sm:$0xff] 0.0
      %58 = vst [vmem:[#allocation2 + $0x20] sm:$0xff] 0.0
      %59 = vst [vmem:[#allocation2 + $0x28] sm:$0xff] 0.0
      %60 = vst [vmem:[#allocation2 + $0x30] sm:$0xff] 0.0
      %61 = vst [vmem:[#allocation2 + $0x38] sm:$0xff] 0.0
      %62 = vst [vmem:[#allocation2 + $0x40] sm:$0xff] 0.0
      %63 = vst [vmem:[#allocation2 + $0x48] sm:$0xff] 0.0
      %64 = vst [vmem:[#allocation2 + $0x50] sm:$0xff] 0.0
      %65 = vst [vmem:[#allocation2 + $0x58] sm:$0xff] 0.0
      %66 = vst [vmem:[#allocation2 + $0x60] sm:$0xff] 0.0
      %67 = vst [vmem:[#allocation2 + $0x68] sm:$0xff] 0.0
      %68 = vst [vmem:[#allocation2 + $0x70] sm:$0xff] 0.0
      %69 = vst [vmem:[#allocation2 + $0x78] sm:$0xff] 0.0
    $region29: #{tpu_custom_call.1} parent=1 // pred_fallthru
      _
    %v70 = vld [vmem:[#allocation2] sm:$0xff]
    %v71 = vld [vmem:[#allocation2 + $0x8] sm:$0xff]
    %v72 = vld [vmem:[#allocation2 + $0x10] sm:$0xff]
    %v73 = vld [vmem:[#allocation2 + $0x18] sm:$0xff]
    %v74 = vld [vmem:[#allocation2 + $0x20] sm:$0xff]
    %v75 = vld [vmem:[#allocation2 + $0x28] sm:$0xff]
    %v76 = vld [vmem:[#allocation2 + $0x30] sm:$0xff]
    %v77 = vld [vmem:[#allocation2 + $0x38] sm:$0xff]
    %v78 = vld [vmem:[#allocation2 + $0x40] sm:$0xff]
    %v79 = vld [vmem:[#allocation2 + $0x48] sm:$0xff]
    %v80 = vld [vmem:[#allocation2 + $0x50] sm:$0xff]
    %v81 = vld [vmem:[#allocation2 + $0x58] sm:$0xff]
    %v82 = vld [vmem:[#allocation2 + $0x60] sm:$0xff]
    %v83 = vld [vmem:[#allocation2 + $0x68] sm:$0xff]
    %v84 = vld [vmem:[#allocation2 + $0x70] sm:$0xff]
    %v85 = vld [vmem:[#allocation2 + $0x78] sm:$0xff]
    %v86 = vld [vmem:[#allocation3] sm:$0xff]
    %v87 = vld [vmem:[#allocation3 + $0x8] sm:$0xff]
    %v88 = vld [vmem:[#allocation3 + $0x10] sm:$0xff]
    %v89 = vld [vmem:[#allocation3 + $0x18] sm:$0xff]
    %v90 = vld [vmem:[#allocation3 + $0x20] sm:$0xff]
    %v91 = vld [vmem:[#allocation3 + $0x28] sm:$0xff]
    %v92 = vld [vmem:[#allocation3 + $0x30] sm:$0xff]
    %v93 = vld [vmem:[#allocation3 + $0x38] sm:$0xff]
    %v94 = vld [vmem:[#allocation3 + $0x40] sm:$0xff]
    %v95 = vld [vmem:[#allocation3 + $0x48] sm:$0xff]
    %v96 = vld [vmem:[#allocation3 + $0x50] sm:$0xff]
    %v97 = vld [vmem:[#allocation3 + $0x58] sm:$0xff]
    %v98 = vld [vmem:[#allocation3 + $0x60] sm:$0xff]
    %v99 = vld [vmem:[#allocation3 + $0x68] sm:$0xff]
    %v100 = vld [vmem:[#allocation3 + $0x70] sm:$0xff]
    %v101 = vld [vmem:[#allocation3 + $0x78] sm:$0xff]
    %v102 = vld [vmem:[#allocation6] sm:$0xf]
    %v103 = vld [vmem:[#allocation6 + $0x4] sm:$0xf]
    %v104 = vld [vmem:[#allocation6 + $0x8] sm:$0xf]
    %v105 = vld [vmem:[#allocation6 + $0xc] sm:$0xf]
    %v106 = vld [vmem:[#allocation6 + $0x10] sm:$0xf]
    %v107 = vld [vmem:[#allocation6 + $0x14] sm:$0xf]
    %v108 = vld [vmem:[#allocation6 + $0x18] sm:$0xf]
    %v109 = vld [vmem:[#allocation6 + $0x1c] sm:$0xf]
    %v110 = vld [vmem:[#allocation6 + $0x20] sm:$0xf]
    %v111 = vld [vmem:[#allocation6 + $0x24] sm:$0xf]
    %v112 = vld [vmem:[#allocation6 + $0x28] sm:$0xf]
    %v113 = vld [vmem:[#allocation6 + $0x2c] sm:$0xf]
    %v114 = vld [vmem:[#allocation6 + $0x30] sm:$0xf]
    %v115 = vld [vmem:[#allocation6 + $0x34] sm:$0xf]
    %v116 = vld [vmem:[#allocation6 + $0x38] sm:$0xf]
    %v117 = vld [vmem:[#allocation6 + $0x3c] sm:$0xf]
    %v118 = vld [vmem:[#allocation6 + $0x40] sm:$0xf]
    %v119 = vld [vmem:[#allocation6 + $0x44] sm:$0xf]
    %v120 = vld [vmem:[#allocation6 + $0x48] sm:$0xf]
    %v121 = vld [vmem:[#allocation6 + $0x4c] sm:$0xf]
    %v122 = vld [vmem:[#allocation6 + $0x50] sm:$0xf]
    %v123 = vld [vmem:[#allocation6 + $0x54] sm:$0xf]
    %v124 = vld [vmem:[#allocation6 + $0x58] sm:$0xf]
    %v125 = vld [vmem:[#allocation6 + $0x5c] sm:$0xf]
    %v126 = vld [vmem:[#allocation6 + $0x60] sm:$0xf]
    %v127 = vld [vmem:[#allocation6 + $0x64] sm:$0xf]
    %v128 = vld [vmem:[#allocation6 + $0x68] sm:$0xf]
    %v129 = vld [vmem:[#allocation6 + $0x6c] sm:$0xf]
    %v130 = vld [vmem:[#allocation6 + $0x70] sm:$0xf]
    %v131 = vld [vmem:[#allocation6 + $0x74] sm:$0xf]
    %v132 = vld [vmem:[#allocation6 + $0x78] sm:$0xf]
    %v133 = vld [vmem:[#allocation6 + $0x7c] sm:$0xf]
    %v150 = vunpack.c.l.b16 %v86
    %v151 = vunpack.c.h.b16 %v86
    %v152 = vunpack.c.l.b16 %v87
    %v153 = vunpack.c.h.b16 %v87
    %v154 = vunpack.c.l.b16 %v88
    %v155 = vunpack.c.h.b16 %v88
    %v156 = vunpack.c.l.b16 %v89
    %v157 = vunpack.c.h.b16 %v89
    %v158 = vunpack.c.l.b16 %v90
    %v159 = vunpack.c.h.b16 %v90
    %v160 = vunpack.c.l.b16 %v91
    %v161 = vunpack.c.h.b16 %v91
    %v162 = vunpack.c.l.b16 %v92
    %v163 = vunpack.c.h.b16 %v92
    %v164 = vunpack.c.l.b16 %v93
    %v165 = vunpack.c.h.b16 %v93
    %v166 = vunpack.c.l.b16 %v94
    %v167 = vunpack.c.h.b16 %v94
    %v168 = vunpack.c.l.b16 %v95
    %v169 = vunpack.c.h.b16 %v95
    %v170 = vunpack.c.l.b16 %v96
    %v171 = vunpack.c.h.b16 %v96
    %v172 = vunpack.c.l.b16 %v97
    %v173 = vunpack.c.h.b16 %v97
    %v174 = vunpack.c.l.b16 %v98
    %v175 = vunpack.c.h.b16 %v98
    %v176 = vunpack.c.l.b16 %v99
    %v177 = vunpack.c.h.b16 %v99
    %v178 = vunpack.c.l.b16 %v100
    %v179 = vunpack.c.h.b16 %v100
    %v180 = vunpack.c.l.b16 %v101
    %v181 = vunpack.c.h.b16 %v101
    %v182 = vpack.c.b16 %v152, %v150
    %v183 = vpack.c.b16 %v153, %v151
    %v184 = vpack.c.b16 %v156, %v154
    %v185 = vpack.c.b16 %v157, %v155
    %v186 = vpack.c.b16 %v160, %v158
    %v187 = vpack.c.b16 %v161, %v159
    %v188 = vpack.c.b16 %v164, %v162
    %v189 = vpack.c.b16 %v165, %v163
    %v190 = vpack.c.b16 %v168, %v166
    %v191 = vpack.c.b16 %v169, %v167
    %v192 = vpack.c.b16 %v172, %v170
    %v193 = vpack.c.b16 %v173, %v171
    %v194 = vpack.c.b16 %v176, %v174
    %v195 = vpack.c.b16 %v177, %v175
    %v196 = vpack.c.b16 %v180, %v178
    %v197 = vpack.c.b16 %v181, %v179
    %v246 = vunpack.c.l.b16 %v102
    %v247 = vunpack.c.l.b16 %v103
    %v248 = vunpack.c.l.b16 %v104
    %v249 = vunpack.c.l.b16 %v105
    %v250 = vunpack.c.l.b16 %v106
    %v251 = vunpack.c.l.b16 %v107
    %v252 = vunpack.c.l.b16 %v108
    %v253 = vunpack.c.l.b16 %v109
    %v254 = vunpack.c.l.b16 %v110
    %v255 = vunpack.c.l.b16 %v111
    %v256 = vunpack.c.l.b16 %v112
    %v257 = vunpack.c.l.b16 %v113
    %v258 = vunpack.c.l.b16 %v114
    %v259 = vunpack.c.l.b16 %v115
    %v260 = vunpack.c.l.b16 %v116
    %v261 = vunpack.c.l.b16 %v117
    %v262 = vunpack.c.l.b16 %v118
    %v263 = vunpack.c.l.b16 %v119
    %v264 = vunpack.c.l.b16 %v120
    %v265 = vunpack.c.l.b16 %v121
    %v266 = vunpack.c.l.b16 %v122
    %v267 = vunpack.c.l.b16 %v123
    %v268 = vunpack.c.l.b16 %v124
    %v269 = vunpack.c.l.b16 %v125
    %v270 = vunpack.c.l.b16 %v126
    %v271 = vunpack.c.l.b16 %v127
    %v272 = vunpack.c.l.b16 %v128
    %v273 = vunpack.c.l.b16 %v129
    %v274 = vunpack.c.l.b16 %v130
    %v275 = vunpack.c.l.b16 %v131
    %v276 = vunpack.c.l.b16 %v132
    %v277 = vunpack.c.l.b16 %v133
    %v278 = vpack.c.b16 %v247, %v246
    %v279 = vpack.c.b16 %v249, %v248
    %v280 = vpack.c.b16 %v251, %v250
    %v281 = vpack.c.b16 %v253, %v252
    %v282 = vpack.c.b16 %v255, %v254
    %v283 = vpack.c.b16 %v257, %v256
    %v284 = vpack.c.b16 %v259, %v258
    %v285 = vpack.c.b16 %v261, %v260
    %v286 = vpack.c.b16 %v263, %v262
    %v287 = vpack.c.b16 %v265, %v264
    %v288 = vpack.c.b16 %v267, %v266
    %v289 = vpack.c.b16 %v269, %v268
    %v290 = vpack.c.b16 %v271, %v270
    %v291 = vpack.c.b16 %v273, %v272
    %v292 = vpack.c.b16 %v275, %v274
    %v293 = vpack.c.b16 %v277, %v276
    %310 = vmatpush.bf16.msra.mxu0 %v285
    %311 = vmatpush.bf16.msra.mxu0 %v284
    %312 = vmatpush.bf16.msra.mxu0 %v283
    %313 = vmatpush.bf16.msra.mxu0 %v282
    %314 = vmatpush.bf16.msra.mxu0 %v281
    %315 = vmatpush.bf16.msra.mxu0 %v280
    %316 = vmatpush.bf16.msra.mxu0 %v279
    %317 = vmatpush.bf16.msra.mxu0 %v278
    %318 = vmatmul.bf16.gmra.mxu0 %v182
    %v319 = vpop.f32.mrf.mxu0
    %v320 = vadd.f32 0.0, %v319
    %v321 = vpop.f32.mrf.mxu0
    %v322 = vadd.f32 0.0, %v321
    %323 = vmatmul.bf16.gmra.mxu0 %v184
    %v324 = vpop.f32.mrf.mxu0
    %v325 = vadd.f32 0.0, %v324
    %v326 = vpop.f32.mrf.mxu0
    %v327 = vadd.f32 0.0, %v326
    %328 = vmatmul.bf16.gmra.mxu0 %v186
    %v329 = vpop.f32.mrf.mxu0
    %v330 = vadd.f32 0.0, %v329
    %v331 = vpop.f32.mrf.mxu0
    %v332 = vadd.f32 0.0, %v331
    %333 = vmatmul.bf16.gmra.mxu0 %v188
    %v334 = vpop.f32.mrf.mxu0
    %v335 = vadd.f32 0.0, %v334
    %v336 = vpop.f32.mrf.mxu0
    %v337 = vadd.f32 0.0, %v336
    %338 = vmatmul.bf16.gmra.mxu0 %v190
    %v339 = vpop.f32.mrf.mxu0
    %v340 = vadd.f32 0.0, %v339
    %v341 = vpop.f32.mrf.mxu0
    %v342 = vadd.f32 0.0, %v341
    %343 = vmatmul.bf16.gmra.mxu0 %v192
    %v344 = vpop.f32.mrf.mxu0
    %v345 = vadd.f32 0.0, %v344
    %v346 = vpop.f32.mrf.mxu0
    %v347 = vadd.f32 0.0, %v346
    %348 = vmatmul.bf16.gmra.mxu0 %v194
    %v349 = vpop.f32.mrf.mxu0
    %v350 = vadd.f32 0.0, %v349
    %v351 = vpop.f32.mrf.mxu0
    %v352 = vadd.f32 0.0, %v351
    %353 = vmatmul.bf16.gmra.mxu0 %v196
    %v354 = vpop.f32.mrf.mxu0
    %v355 = vadd.f32 0.0, %v354
    %v356 = vpop.f32.mrf.mxu0
    %v357 = vadd.f32 0.0, %v356
    %358 = vdwg.mxu0
    %359 = vmatpush.bf16.msra.mxu0 %v293
    %360 = vmatpush.bf16.msra.mxu0 %v292
    %361 = vmatpush.bf16.msra.mxu0 %v291
    %362 = vmatpush.bf16.msra.mxu0 %v290
    %363 = vmatpush.bf16.msra.mxu0 %v289
    %364 = vmatpush.bf16.msra.mxu0 %v288
    %365 = vmatpush.bf16.msra.mxu0 %v287
    %366 = vmatpush.bf16.msra.mxu0 %v286
    %367 = vmatmul.bf16.gmra.mxu0 %v183
    %v368 = vpop.f32.mrf.mxu0
    %v369 = vadd.f32 %v320, %v368
    %v370 = vpop.f32.mrf.mxu0
    %v371 = vadd.f32 %v322, %v370
    %372 = vmatmul.bf16.gmra.mxu0 %v185
    %v373 = vpop.f32.mrf.mxu0
    %v374 = vadd.f32 %v325, %v373
    %v375 = vpop.f32.mrf.mxu0
    %v376 = vadd.f32 %v327, %v375
    %377 = vmatmul.bf16.gmra.mxu0 %v187
    %v378 = vpop.f32.mrf.mxu0
    %v379 = vadd.f32 %v330, %v378
    %v380 = vpop.f32.mrf.mxu0
    %v381 = vadd.f32 %v332, %v380
    %382 = vmatmul.bf16.gmra.mxu0 %v189
    %v383 = vpop.f32.mrf.mxu0
    %v384 = vadd.f32 %v335, %v383
    %v385 = vpop.f32.mrf.mxu0
    %v386 = vadd.f32 %v337, %v385
    %387 = vmatmul.bf16.gmra.mxu0 %v191
    %v388 = vpop.f32.mrf.mxu0
    %v389 = vadd.f32 %v340, %v388
    %v390 = vpop.f32.mrf.mxu0
    %v391 = vadd.f32 %v342, %v390
    %392 = vmatmul.bf16.gmra.mxu0 %v193
    %v393 = vpop.f32.mrf.mxu0
    %v394 = vadd.f32 %v345, %v393
    %v395 = vpop.f32.mrf.mxu0
    %v396 = vadd.f32 %v347, %v395
    %397 = vmatmul.bf16.gmra.mxu0 %v195
    %v398 = vpop.f32.mrf.mxu0
    %v399 = vadd.f32 %v350, %v398
    %v400 = vpop.f32.mrf.mxu0
    %v401 = vadd.f32 %v352, %v400
    %402 = vmatmul.bf16.gmra.mxu0 %v197
    %v403 = vpop.f32.mrf.mxu0
    %v404 = vadd.f32 %v355, %v403
    %v405 = vpop.f32.mrf.mxu0
    %v406 = vadd.f32 %v357, %v405
    %407 = vdwg.mxu0
    %v408 = vadd.f32 %v70, %v369
    %v409 = vadd.f32 %v71, %v371
    %v410 = vadd.f32 %v72, %v374
    %v411 = vadd.f32 %v73, %v376
    %v412 = vadd.f32 %v74, %v379
    %v413 = vadd.f32 %v75, %v381
    %v414 = vadd.f32 %v76, %v384
    %v415 = vadd.f32 %v77, %v386
    %v416 = vadd.f32 %v78, %v389
    %v417 = vadd.f32 %v79, %v391
    %v418 = vadd.f32 %v80, %v394
    %v419 = vadd.f32 %v81, %v396
    %v420 = vadd.f32 %v82, %v399
    %v421 = vadd.f32 %v83, %v401
    %v422 = vadd.f32 %v84, %v404
    %v423 = vadd.f32 %v85, %v406
    %424 = vst [vmem:[#allocation2] sm:$0xff] %v408
    %425 = vst [vmem:[#allocation2 + $0x8] sm:$0xff] %v409
    %426 = vst [vmem:[#allocation2 + $0x10] sm:$0xff] %v410
    %427 = vst [vmem:[#allocation2 + $0x18] sm:$0xff] %v411
    %428 = vst [vmem:[#allocation2 + $0x20] sm:$0xff] %v412
    %429 = vst [vmem:[#allocation2 + $0x28] sm:$0xff] %v413
    %430 = vst [vmem:[#allocation2 + $0x30] sm:$0xff] %v414
    %431 = vst [vmem:[#allocation2 + $0x38] sm:$0xff] %v415
    %432 = vst [vmem:[#allocation2 + $0x40] sm:$0xff] %v416
    %433 = vst [vmem:[#allocation2 + $0x48] sm:$0xff] %v417
    %434 = vst [vmem:[#allocation2 + $0x50] sm:$0xff] %v418
    %435 = vst [vmem:[#allocation2 + $0x58] sm:$0xff] %v419
    %436 = vst [vmem:[#allocation2 + $0x60] sm:$0xff] %v420
    %437 = vst [vmem:[#allocation2 + $0x68] sm:$0xff] %v421
    %438 = vst [vmem:[#allocation2 + $0x70] sm:$0xff] %v422
    %439 = vst [vmem:[#allocation2 + $0x78] sm:$0xff] %v423
    // Predicated region
    $region30: #{tpu_custom_call.1} parent=1 // pred_check
      %p440 = pneg %p50
    $region31: #{tpu_custom_call.1} parent=1 // pred_check_branch
      %442 = sbr.rel (%p440) target = $region33
    $region32: #{tpu_custom_call.1} parent=1 // pred_region
      %v443 = vld [vmem:[#allocation2] sm:$0xff]
      %v444 = vld [vmem:[#allocation2 + $0x8] sm:$0xff]
      %v445 = vld [vmem:[#allocation2 + $0x10] sm:$0xff]
      %v446 = vld [vmem:[#allocation2 + $0x18] sm:$0xff]
      %v447 = vld [vmem:[#allocation2 + $0x20] sm:$0xff]
      %v448 = vld [vmem:[#allocation2 + $0x28] sm:$0xff]
      %v449 = vld [vmem:[#allocation2 + $0x30] sm:$0xff]
      %v450 = vld [vmem:[#allocation2 + $0x38] sm:$0xff]
      %v451 = vld [vmem:[#allocation2 + $0x40] sm:$0xff]
      %v452 = vld [vmem:[#allocation2 + $0x48] sm:$0xff]
      %v453 = vld [vmem:[#allocation2 + $0x50] sm:$0xff]
      %v454 = vld [vmem:[#allocation2 + $0x58] sm:$0xff]
      %v455 = vld [vmem:[#allocation2 + $0x60] sm:$0xff]
      %v456 = vld [vmem:[#allocation2 + $0x68] sm:$0xff]
      %v457 = vld [vmem:[#allocation2 + $0x70] sm:$0xff]
      %v458 = vld [vmem:[#allocation2 + $0x78] sm:$0xff]
      %v459 = vld [vmem:[%s2] sm:$0x1]
      %v461 = vperm.slane %v459, 0
      %v463 = vmul.f32 %v443, %v461
      %v464 = vmul.f32 %v444, %v461
      %v465 = vmul.f32 %v445, %v461
      %v466 = vmul.f32 %v446, %v461
      %v467 = vmul.f32 %v447, %v461
      %v468 = vmul.f32 %v448, %v461
      %v469 = vmul.f32 %v449, %v461
      %v470 = vmul.f32 %v450, %v461
      %v471 = vmul.f32 %v451, %v461
      %v472 = vmul.f32 %v452, %v461
      %v473 = vmul.f32 %v453, %v461
      %v474 = vmul.f32 %v454, %v461
      %v475 = vmul.f32 %v455, %v461
      %v476 = vmul.f32 %v456, %v461
      %v477 = vmul.f32 %v457, %v461
      %v478 = vmul.f32 %v458, %v461
      %v479 = vld [vmem:[%s3] sm:$0x1]
      %v481 = vperm.slane %v479, 0
      %v483 = vadd.f32 %v463, %v481
      %v484 = vadd.f32 %v464, %v481
      %v485 = vadd.f32 %v465, %v481
      %v486 = vadd.f32 %v466, %v481
      %v487 = vadd.f32 %v467, %v481
      %v488 = vadd.f32 %v468, %v481
      %v489 = vadd.f32 %v469, %v481
      %v490 = vadd.f32 %v470, %v481
      %v491 = vadd.f32 %v471, %v481
      %v492 = vadd.f32 %v472, %v481
      %v493 = vadd.f32 %v473, %v481
      %v494 = vadd.f32 %v474, %v481
      %v495 = vadd.f32 %v475, %v481
      %v496 = vadd.f32 %v476, %v481
      %v497 = vadd.f32 %v477, %v481
      %v498 = vadd.f32 %v478, %v481
      %v499 = vmax.f32 %v483, 0.0
      %v500 = vmax.f32 %v484, 0.0
      %v501 = vmax.f32 %v485, 0.0
      %v502 = vmax.f32 %v486, 0.0
      %v503 = vmax.f32 %v487, 0.0
      %v504 = vmax.f32 %v488, 0.0
      %v505 = vmax.f32 %v489, 0.0
      %v506 = vmax.f32 %v490, 0.0
      %v507 = vmax.f32 %v491, 0.0
      %v508 = vmax.f32 %v492, 0.0
      %v509 = vmax.f32 %v493, 0.0
      %v510 = vmax.f32 %v494, 0.0
      %v511 = vmax.f32 %v495, 0.0
      %v512 = vmax.f32 %v496, 0.0
      %v513 = vmax.f32 %v497, 0.0
      %v514 = vmax.f32 %v498, 0.0
      %515 = vst [vmem:[#allocation8] sm:$0xff] %v499
      %516 = vst [vmem:[#allocation8 + $0x8] sm:$0xff] %v500
      %517 = vst [vmem:[#allocation8 + $0x10] sm:$0xff] %v501
      %518 = vst [vmem:[#allocation8 + $0x18] sm:$0xff] %v502
      %519 = vst [vmem:[#allocation8 + $0x20] sm:$0xff] %v503
      %520 = vst [vmem:[#allocation8 + $0x28] sm:$0xff] %v504
      %521 = vst [vmem:[#allocation8 + $0x30] sm:$0xff] %v505
      %522 = vst [vmem:[#allocation8 + $0x38] sm:$0xff] %v506
      %523 = vst [vmem:[#allocation8 + $0x40] sm:$0xff] %v507
      %524 = vst [vmem:[#allocation8 + $0x48] sm:$0xff] %v508
      %525 = vst [vmem:[#allocation8 + $0x50] sm:$0xff] %v509
      %526 = vst [vmem:[#allocation8 + $0x58] sm:$0xff] %v510
      %527 = vst [vmem:[#allocation8 + $0x60] sm:$0xff] %v511
      %528 = vst [vmem:[#allocation8 + $0x68] sm:$0xff] %v512
      %529 = vst [vmem:[#allocation8 + $0x70] sm:$0xff] %v513
      %530 = vst [vmem:[#allocation8 + $0x78] sm:$0xff] %v514
    $region33: #{tpu_custom_call.1} parent=1 // pred_fallthru
      _
    // Predicated region
    $region34: #{tpu_custom_call.1} parent=1 // pred_check
      _
    $region35: #{tpu_custom_call.1} parent=1 // pred_check_branch
      %532 = sbr.rel (0) target = $region37
    $region36: #{tpu_custom_call.1} parent=1 // pred_region
      %534 = vsyncadd [#allocation5], 0
      %s535 = sshll.u32 [#allocation8], 4
      %s536 = int_to_ptr.vmem [resolvable:$true] %s535
      %s537 = sshll.u32 %s4, 4
      %s538 = int_to_ptr.hbm [resolvable:$true] %s537
      %543 = dma.vmem_to_hbm [thread:$0]  %s536, 2048, %s538, [#allocation5], 128, 128, 8
    $region37: #{tpu_custom_call.1} parent=1 // pred_fallthru
      _
    // Predicated region
    $region38: #{tpu_custom_call.1} parent=1 // pred_check
      _
    $region39: #{tpu_custom_call.1} parent=1 // pred_check_branch
      %545 = sbr.rel (0) target = $region41
    $region40: #{tpu_custom_call.1} parent=1 // pred_region
      %547 = dma.done [#allocation5], 2048
    $region41: #{tpu_custom_call.1} parent=1 // pred_fallthru
      _
    %548 = vsyncpa [#allocation4], 1
    %549 = vsyncpa [#allocation7], 1
    %550 = vsyncpa [#allocation5], 1

</llo_original>
